<compile_context>
chip_gen: v7x
topology: tpu7x:2x2x1
jax: 0.10.0
libtpu: 0.0.40
codegen_flags: <defaults>
</compile_context>

<pallas_src>
from functools import partial

import jax
import jax.numpy as jnp
from jax.experimental import pallas as pl
from jax.experimental.pallas import tpu as pltpu

Z_DIM = 100
H1, H2, OUT = 128, 256, 784          # 784 = 28 * 28
Z_PAD = 128                          # 100 -> 128 (K of fc1, (8,128)-aligned)


def _generator_kernel(z_ref, w1_ref, b1_ref, w2_ref, b2_ref, w3_ref, b3_ref,
                      o_ref):
    # fc1 + relu  (bf16 MXU, f32 accumulate; padded z rows/cols are zero)
    h1 = jnp.dot(z_ref[...], w1_ref[...], preferred_element_type=jnp.float32)
    h1 = jnp.maximum(h1 + b1_ref[...], 0.0).astype(jnp.bfloat16)
    # fc2 + relu
    h2 = jnp.dot(h1, w2_ref[...], preferred_element_type=jnp.float32)
    h2 = jnp.maximum(h2 + b2_ref[...], 0.0).astype(jnp.bfloat16)
    # fc3 + tanh, stored directly at the output dtype (default bf16)
    h3 = jnp.dot(h2, w3_ref[...], preferred_element_type=jnp.float32)
    o_ref[...] = jnp.tanh(h3 + b3_ref[...]).astype(o_ref.dtype)


def prepare_params(params):
    """One-time pad + cast of PyTorch-shaped f32 params (hoisted out of the
    per-call path).

    Weights come in as (in, out) = W.T of nn.Linear; biases as (1, out).
    fc1's input dim is zero-padded 100 -> 128 (math unchanged); fc3 keeps
    exactly 784 output columns.  Weights -> bf16 (MXU), biases stay f32.
    """
    w1, b1, w2, b2, w3, b3 = params
    w1p = jnp.zeros((Z_PAD, H1), jnp.float32).at[:Z_DIM, :].set(w1)
    return (w1p.astype(jnp.bfloat16), b1,
            w2.astype(jnp.bfloat16), b2,
            w3.astype(jnp.bfloat16), b3)


@partial(jax.jit, static_argnames=("tm", "out_dtype"))
def generator_forward(z, prepared, *, tm=None, out_dtype=jnp.bfloat16):
    """z: (B, Z_DIM) float32 -> (B, 1, 28, 28) `out_dtype` (default bf16)."""
    B = z.shape[0]
    w1p, b1, w2p, b2, w3p, b3 = prepared

    if tm is None:
        # Big batch tile (512) once the batch allows it; small batches use a
        # single 8-aligned tile.  Per-step VMEM at tm=512 / bf16 out:
        # ~0.78 MiB out + ~0.13 MiB z (x2 buffers) + ~0.5 MiB weights -> well
        # inside default scoped VMEM on v5e/v6e/v7x.
        tm = min(512, max(8, pl.cdiv(B, 8) * 8))
    b_pad = pl.cdiv(B, tm) * tm
    n_steps = b_pad // tm

    # Pad z: batch -> tile multiple, features 100 -> 128 (zeros keep the math
    # exact); bf16 cast for the MXU.  Inside the jit so XLA fuses pad+cast.
    z_p = jnp.zeros((b_pad, Z_PAD), jnp.bfloat16)
    z_p = z_p.at[:B, :Z_DIM].set(z.astype(jnp.bfloat16))

    # v7x: shard batch steps across the 2 TensorCores when there are >= 2
    # steps; single-step grids (tiny batch) keep plain PARALLEL.
    dim_sem = (pltpu.CORE_PARALLEL,) if n_steps >= 2 else (pltpu.PARALLEL,)

    out2d = pl.pallas_call(
        _generator_kernel,
        out_shape=jax.ShapeDtypeStruct((b_pad, OUT), out_dtype),
        grid_spec=pltpu.PrefetchScalarGridSpec(
            num_scalar_prefetch=0,
            grid=(n_steps,),
            in_specs=[
                pl.BlockSpec((tm, Z_PAD), lambda i: (i, 0)),    # z tile (pipelined)
                pl.BlockSpec((Z_PAD, H1), lambda i: (0, 0)),    # w1 (resident)
                pl.BlockSpec((1, H1), lambda i: (0, 0)),        # b1
                pl.BlockSpec((H1, H2), lambda i: (0, 0)),       # w2
                pl.BlockSpec((1, H2), lambda i: (0, 0)),        # b2
                pl.BlockSpec((H2, OUT), lambda i: (0, 0)),      # w3
                pl.BlockSpec((1, OUT), lambda i: (0, 0)),       # b3
            ],
            out_specs=pl.BlockSpec((tm, OUT), lambda i: (i, 0)),
        ),
        compiler_params=pltpu.CompilerParams(dimension_semantics=dim_sem),
    )(z_p, w1p, b1, w2p, b2, w3p, b3)

    # Strip batch padding only (feature dim is already exactly 784), then the
    # PyTorch view(-1, 1, 28, 28).  When B % tm == 0 the slice is a no-op.
    return out2d[:B].reshape(-1, 1, 28, 28)


def init_params(key):
    """Deterministic init; weights stored as (in, out) = W.T of nn.Linear."""
    ks = jax.random.split(key, 6)

    def linear(kw, kb, fan_in, fan_out):
        # Mimic PyTorch default: U(-1/sqrt(fan_in), 1/sqrt(fan_in))
        bound = 1.0 / jnp.sqrt(fan_in)
        w = jax.random.uniform(kw, (fan_in, fan_out), jnp.float32, -bound, bound)
        b = jax.random.uniform(kb, (1, fan_out), jnp.float32, -bound, bound)
        return w, b

    w1, b1 = linear(ks[0], ks[1], Z_DIM, H1)
    w2, b2 = linear(ks[2], ks[3], H1, H2)
    w3, b3 = linear(ks[4], ks[5], H2, OUT)
    return (w1, b1, w2, b2, w3, b3)


def _reference_f32(z, params):
    w1, b1, w2, b2, w3, b3 = params
    x = jnp.maximum(z @ w1 + b1, 0.0)
    x = jnp.maximum(x @ w2 + b2, 0.0)
    x = jnp.tanh(x @ w3 + b3)
    return x.reshape(-1, 1, 28, 28)


if __name__ == "__main__":
    key = jax.random.PRNGKey(0)
    k_params, k_z = jax.random.split(key)

    params = init_params(k_params)
    prepared = prepare_params(params)        # one-time pad + bf16 cast

    B = 8
    z = jax.random.normal(k_z, (B, Z_DIM), dtype=jnp.float32)

    out = generator_forward(z, prepared)
    out = jax.block_until_ready(out)

    assert out.shape == (B, 1, 28, 28), out.shape
    assert out.dtype == jnp.bfloat16, out.dtype

    # Kernel runs bf16 matmuls (f32 accumulation) and stores a bf16 result, so
    # compare against the f32 reference with a bf16-appropriate tolerance.
    ref = _reference_f32(z, params)
    err = float(jnp.max(jnp.abs(out.astype(jnp.float32) - ref)))
    assert err < 2e-2, err

    print("KERNEL_OK")
</pallas_src>

<mosaic_0001>
module attributes {stable_mosaic.version = 11 : i64} {
  func.func @_generator_kernel(%arg0: i32, %arg1: memref<8x128xbf16, #tpu.memory_space<vmem>>, %arg2: memref<128x128xbf16, #tpu.memory_space<vmem>>, %arg3: memref<1x128xf32, #tpu.memory_space<vmem>>, %arg4: memref<128x256xbf16, #tpu.memory_space<vmem>>, %arg5: memref<1x256xf32, #tpu.memory_space<vmem>>, %arg6: memref<256x784xbf16, #tpu.memory_space<vmem>>, %arg7: memref<1x784xf32, #tpu.memory_space<vmem>>, %arg8: memref<8x784xbf16, #tpu.memory_space<vmem>>) attributes {dimension_semantics = [#tpu.dimension_semantics<parallel>], iteration_bounds = array<i64: 1>, scalar_prefetch = 0 : i64, scratch_operands = 0 : i64, tpu.core_type = #tpu.core_type<tc>, window_params = [{transform_indices = @transform_0, window_bounds = array<i64: 8, 128>}, {pipeline_mode = #tpu.pipeline_mode<synchronous>, transform_indices = @transform_1, window_bounds = array<i64: 128, 128>}, {pipeline_mode = #tpu.pipeline_mode<synchronous>, transform_indices = @transform_2, window_bounds = array<i64: 1, 128>}, {pipeline_mode = #tpu.pipeline_mode<synchronous>, transform_indices = @transform_3, window_bounds = array<i64: 128, 256>}, {pipeline_mode = #tpu.pipeline_mode<synchronous>, transform_indices = @transform_4, window_bounds = array<i64: 1, 256>}, {pipeline_mode = #tpu.pipeline_mode<synchronous>, transform_indices = @transform_5, window_bounds = array<i64: 256, 784>}, {pipeline_mode = #tpu.pipeline_mode<synchronous>, transform_indices = @transform_6, window_bounds = array<i64: 1, 784>}, {transform_indices = @transform_7, window_bounds = array<i64: 8, 784>}]} {
    %c0 = arith.constant 0 : index
    %c0_0 = arith.constant 0 : index
    %0 = vector.load %arg1[%c0, %c0_0] : memref<8x128xbf16, #tpu.memory_space<vmem>>, vector<8x128xbf16>
    %c0_1 = arith.constant 0 : index
    %c0_2 = arith.constant 0 : index
    %1 = vector.load %arg2[%c0_1, %c0_2] : memref<128x128xbf16, #tpu.memory_space<vmem>>, vector<128x128xbf16>
    %cst = arith.constant dense<0.000000e+00> : vector<8x128xf32>
    %2 = tpu.matmul %0, %1, %cst {dimension_numbers = #tpu.dot_dimension_numbers<[1], [0], [0], [1], [0, 0, 1, 1], [], []>} : vector<8x128xbf16>, vector<128x128xbf16>, vector<8x128xf32> -> vector<8x128xf32>
    %c0_3 = arith.constant 0 : index
    %c0_4 = arith.constant 0 : index
    %3 = vector.load %arg3[%c0_3, %c0_4] : memref<1x128xf32, #tpu.memory_space<vmem>>, vector<1x128xf32>
    %4 = vector.broadcast %3 : vector<1x128xf32> to vector<8x128xf32>
    %5 = arith.addf %2, %4 : vector<8x128xf32>
    %cst_5 = arith.constant 0.000000e+00 : f32
    %6 = vector.broadcast %cst_5 : f32 to vector<8x128xf32>
    %7 = arith.maximumf %5, %6 : vector<8x128xf32>
    %8 = arith.truncf %7 : vector<8x128xf32> to vector<8x128xbf16>
    %c0_6 = arith.constant 0 : index
    %c0_7 = arith.constant 0 : index
    %9 = vector.load %arg4[%c0_6, %c0_7] : memref<128x256xbf16, #tpu.memory_space<vmem>>, vector<128x256xbf16>
    %cst_8 = arith.constant dense<0.000000e+00> : vector<8x256xf32>
    %10 = tpu.matmul %8, %9, %cst_8 {dimension_numbers = #tpu.dot_dimension_numbers<[1], [0], [0], [1], [0, 0, 1, 1], [], []>} : vector<8x128xbf16>, vector<128x256xbf16>, vector<8x256xf32> -> vector<8x256xf32>
    %c0_9 = arith.constant 0 : index
    %c0_10 = arith.constant 0 : index
    %11 = vector.load %arg5[%c0_9, %c0_10] : memref<1x256xf32, #tpu.memory_space<vmem>>, vector<1x256xf32>
    %12 = vector.broadcast %11 : vector<1x256xf32> to vector<8x256xf32>
    %13 = arith.addf %10, %12 : vector<8x256xf32>
    %cst_11 = arith.constant 0.000000e+00 : f32
    %14 = vector.broadcast %cst_11 : f32 to vector<8x256xf32>
    %15 = arith.maximumf %13, %14 : vector<8x256xf32>
    %16 = arith.truncf %15 : vector<8x256xf32> to vector<8x256xbf16>
    %c0_12 = arith.constant 0 : index
    %c0_13 = arith.constant 0 : index
    %17 = vector.load %arg6[%c0_12, %c0_13] : memref<256x784xbf16, #tpu.memory_space<vmem>>, vector<256x784xbf16>
    %cst_14 = arith.constant dense<0.000000e+00> : vector<8x784xf32>
    %18 = tpu.matmul %16, %17, %cst_14 {dimension_numbers = #tpu.dot_dimension_numbers<[1], [0], [0], [1], [0, 0, 1, 1], [], []>} : vector<8x256xbf16>, vector<256x784xbf16>, vector<8x784xf32> -> vector<8x784xf32>
    %c0_15 = arith.constant 0 : index
    %c0_16 = arith.constant 0 : index
    %19 = vector.load %arg7[%c0_15, %c0_16] : memref<1x784xf32, #tpu.memory_space<vmem>>, vector<1x784xf32>
    %20 = vector.broadcast %19 : vector<1x784xf32> to vector<8x784xf32>
    %21 = arith.addf %18, %20 : vector<8x784xf32>
    %22 = math.tanh %21 : vector<8x784xf32>
    %23 = arith.truncf %22 : vector<8x784xf32> to vector<8x784xbf16>
    %c0_17 = arith.constant 0 : index
    %c0_18 = arith.constant 0 : index
    %24 = vector.load %arg8[%c0_17, %c0_18] : memref<8x784xbf16, #tpu.memory_space<vmem>>, vector<8x784xbf16>
    tpu.vector_store %arg8[%c0_17, %c0_18], %23 {strides = array<i32>} : memref<8x784xbf16, #tpu.memory_space<vmem>>, vector<8x784xbf16>,
    return
  }
  func.func @transform_0(%arg0: i32) -> (i32, i32) {
    %c0_i32 = arith.constant 0 : i32
    %c0_i32_0 = arith.constant 0 : i32
    return %arg0, %c0_i32 : i32, i32
  }
  func.func @transform_1(%arg0: i32) -> (i32, i32) {
    %c0_i32 = arith.constant 0 : i32
    %c0_i32_0 = arith.constant 0 : i32
    %c0_i32_1 = arith.constant 0 : i32
    return %c0_i32, %c0_i32_0 : i32, i32
  }
  func.func @transform_2(%arg0: i32) -> (i32, i32) {
    %c0_i32 = arith.constant 0 : i32
    %c0_i32_0 = arith.constant 0 : i32
    %c0_i32_1 = arith.constant 0 : i32
    return %c0_i32, %c0_i32_0 : i32, i32
  }
  func.func @transform_3(%arg0: i32) -> (i32, i32) {
    %c0_i32 = arith.constant 0 : i32
    %c0_i32_0 = arith.constant 0 : i32
    %c0_i32_1 = arith.constant 0 : i32
    return %c0_i32, %c0_i32_0 : i32, i32
  }
  func.func @transform_4(%arg0: i32) -> (i32, i32) {
    %c0_i32 = arith.constant 0 : i32
    %c0_i32_0 = arith.constant 0 : i32
    %c0_i32_1 = arith.constant 0 : i32
    return %c0_i32, %c0_i32_0 : i32, i32
  }
  func.func @transform_5(%arg0: i32) -> (i32, i32) {
    %c0_i32 = arith.constant 0 : i32
    %c0_i32_0 = arith.constant 0 : i32
    %c0_i32_1 = arith.constant 0 : i32
    return %c0_i32, %c0_i32_0 : i32, i32
  }
  func.func @transform_6(%arg0: i32) -> (i32, i32) {
    %c0_i32 = arith.constant 0 : i32
    %c0_i32_0 = arith.constant 0 : i32
    %c0_i32_1 = arith.constant 0 : i32
    return %c0_i32, %c0_i32_0 : i32, i32
  }
  func.func @transform_7(%arg0: i32) -> (i32, i32) {
    %c0_i32 = arith.constant 0 : i32
    %c0_i32_0 = arith.constant 0 : i32
    return %arg0, %c0_i32 : i32, i32
  }
}

</mosaic_0001>

<llo_original>
// kernel: generator_forward.1
$region0: #{generator_forward.1}
  #allocation0 [shape = 'u32[]', space=smem, size = 0x4, offset = 0x4, fixed_abs, tag = 'smem constant byte address 0x4 - core index']
  #allocation1 [shape = 'u32[144,128]{1,0:T(1,128)}', space=vmem, size = 0x12000, scoped, tag = 'internal scratch']
  %s0 = inlined_call_operand.vmem [shape: bf16[8,128], index: 0, kind: input, shape index: {}]
  %s1 = inlined_call_operand.vmem [shape: bf16[128,128], index: 1, kind: input, shape index: {}]
  %s2 = inlined_call_operand.vmem [shape: f32[1,128], index: 2, kind: input, shape index: {}]
  %s3 = inlined_call_operand.vmem [shape: bf16[128,256], index: 3, kind: input, shape index: {}]
  %s4 = inlined_call_operand.vmem [shape: f32[1,256], index: 4, kind: input, shape index: {}]
  %s5 = inlined_call_operand.vmem [shape: bf16[256,784], index: 5, kind: input, shape index: {}]
  %s6 = inlined_call_operand.vmem [shape: f32[1,784], index: 6, kind: input, shape index: {}]
  %s7 = inlined_call_operand.vmem [shape: bf16[8,784], index: 7, kind: output, shape index: {}]
  %s8 = sld [smem:[#allocation0]]
  $region38: #{generator_forward.1} parent=0
    _
  %s10 = ssub.s32 1, %s8
  %s11 = scalar_select 0, %s10, %s8
  // Predicated region
  $region2: #{generator_forward.1} parent=0 // pred_check
    _
  $region3: #{generator_forward.1} parent=0 // pred_check_branch
    %13 = sbr.rel (0) target = $region5
  $region4: #{generator_forward.1} parent=0 // pred_region
    _
  $region5: #{generator_forward.1} parent=0 // pred_fallthru
    _
  // Predicated region
  $region6: #{generator_forward.1} parent=0 // pred_check
    _
  $region7: #{generator_forward.1} parent=0 // pred_check_branch
    %15 = sbr.rel (0) target = $region9
  $region8: #{generator_forward.1} parent=0 // pred_region
    _
  $region9: #{generator_forward.1} parent=0 // pred_fallthru
    _
  // Predicated region
  $region10: #{generator_forward.1} parent=0 // pred_check
    _
  $region11: #{generator_forward.1} parent=0 // pred_check_branch
    %17 = sbr.rel (0) target = $region13
  $region12: #{generator_forward.1} parent=0 // pred_region
    _
  $region13: #{generator_forward.1} parent=0 // pred_fallthru
    _
  // Predicated region
  $region14: #{generator_forward.1} parent=0 // pred_check
    _
  $region15: #{generator_forward.1} parent=0 // pred_check_branch
    %19 = sbr.rel (0) target = $region17
  $region16: #{generator_forward.1} parent=0 // pred_region
    _
  $region17: #{generator_forward.1} parent=0 // pred_fallthru
    _
  // Predicated region
  $region18: #{generator_forward.1} parent=0 // pred_check
    _
  $region19: #{generator_forward.1} parent=0 // pred_check_branch
    %21 = sbr.rel (0) target = $region21
  $region20: #{generator_forward.1} parent=0 // pred_region
    _
  $region21: #{generator_forward.1} parent=0 // pred_fallthru
    _
  // Predicated region
  $region22: #{generator_forward.1} parent=0 // pred_check
    _
  $region23: #{generator_forward.1} parent=0 // pred_check_branch
    %23 = sbr.rel (0) target = $region25
  $region24: #{generator_forward.1} parent=0 // pred_region
    _
  $region25: #{generator_forward.1} parent=0 // pred_fallthru
    _
  // Predicated region
  $region26: #{generator_forward.1} parent=0 // pred_check
    _
  $region27: #{generator_forward.1} parent=0 // pred_check_branch
    %25 = sbr.rel (0) target = $region29
  $region28: #{generator_forward.1} parent=0 // pred_region
    _
  $region29: #{generator_forward.1} parent=0 // pred_fallthru
    _
  %v27 = vld [vmem:[%s0] sm:$0xf]
  %v28 = vld [vmem:[%s1] sm:$0xf]
  %v29 = vld [vmem:[%s1 + $0x4] sm:$0xf]
  %v30 = vld [vmem:[%s1 + $0x8] sm:$0xf]
  %v31 = vld [vmem:[%s1 + $0xc] sm:$0xf]
  %v32 = vld [vmem:[%s1 + $0x10] sm:$0xf]
  %v33 = vld [vmem:[%s1 + $0x14] sm:$0xf]
  %v34 = vld [vmem:[%s1 + $0x18] sm:$0xf]
  %v35 = vld [vmem:[%s1 + $0x1c] sm:$0xf]
  %v36 = vld [vmem:[%s1 + $0x20] sm:$0xf]
  %v37 = vld [vmem:[%s1 + $0x24] sm:$0xf]
  %v38 = vld [vmem:[%s1 + $0x28] sm:$0xf]
  %v39 = vld [vmem:[%s1 + $0x2c] sm:$0xf]
  %v40 = vld [vmem:[%s1 + $0x30] sm:$0xf]
  %v41 = vld [vmem:[%s1 + $0x34] sm:$0xf]
  %v42 = vld [vmem:[%s1 + $0x38] sm:$0xf]
  %v43 = vld [vmem:[%s1 + $0x3c] sm:$0xf]
  %v44 = vld [vmem:[%s2] sm:$0x1]
  %v46 = vlaneseq
  %v47 = vshrl.u32 %v46, 7
  %v48 = vsub.s32 0, %v47
  %v49 = vrot.slane %v44, %v48
  %v67 = vunpack.c.l.b16 %v28
  %v68 = vunpack.c.l.b16 %v29
  %v69 = vunpack.c.l.b16 %v30
  %v70 = vunpack.c.l.b16 %v31
  %v71 = vunpack.c.l.b16 %v32
  %v72 = vunpack.c.l.b16 %v33
  %v73 = vunpack.c.l.b16 %v34
  %v74 = vunpack.c.l.b16 %v35
  %v75 = vunpack.c.l.b16 %v36
  %v76 = vunpack.c.l.b16 %v37
  %v77 = vunpack.c.l.b16 %v38
  %v78 = vunpack.c.l.b16 %v39
  %v79 = vunpack.c.l.b16 %v40
  %v80 = vunpack.c.l.b16 %v41
  %v81 = vunpack.c.l.b16 %v42
  %v82 = vunpack.c.l.b16 %v43
  %v83 = vpack.c.b16 %v68, %v67
  %v84 = vpack.c.b16 %v70, %v69
  %v85 = vpack.c.b16 %v72, %v71
  %v86 = vpack.c.b16 %v74, %v73
  %v87 = vpack.c.b16 %v76, %v75
  %v88 = vpack.c.b16 %v78, %v77
  %v89 = vpack.c.b16 %v80, %v79
  %v90 = vpack.c.b16 %v82, %v81
  %99 = vmatprep.subr.bf16.mxu0 0
  %100 = vmatpush1.bf16.msra.mxu0 %v83
  %101 = vmatprep.subr.bf16.mxu0 0
  %102 = vmatpush1.bf16.msra.mxu0 %v84
  %103 = vmatprep.subr.bf16.mxu0 0
  %104 = vmatpush1.bf16.msra.mxu0 %v85
  %105 = vmatprep.subr.bf16.mxu0 0
  %106 = vmatpush1.bf16.msra.mxu0 %v86
  %107 = vmatprep.subr.bf16.mxu0 0
  %108 = vmatpush1.bf16.msra.mxu0 %v87
  %109 = vmatprep.subr.bf16.mxu0 0
  %110 = vmatpush1.bf16.msra.mxu0 %v88
  %111 = vmatprep.subr.bf16.mxu0 0
  %112 = vmatpush1.bf16.msra.mxu0 %v89
  %113 = vmatprep.subr.bf16.mxu0 0
  %114 = vmatpush1.bf16.msra.mxu0 %v90
  %115 = vmatprep.subr.bf16.mxu0 0
  %116 = vmatpush1.bf16.msra.mxu0 0
  %117 = vmatprep.subr.bf16.mxu0 0
  %118 = vmatpush1.bf16.msra.mxu0 0
  %119 = vmatprep.subr.bf16.mxu0 0
  %120 = vmatpush1.bf16.msra.mxu0 0
  %121 = vmatprep.subr.bf16.mxu0 0
  %122 = vmatpush1.bf16.msra.mxu0 0
  %123 = vmatprep.subr.bf16.mxu0 0
  %124 = vmatpush1.bf16.msra.mxu0 0
  %125 = vmatprep.subr.bf16.mxu0 0
  %126 = vmatpush1.bf16.msra.mxu0 0
  %127 = vmatprep.subr.bf16.mxu0 0
  %128 = vmatpush1.bf16.msra.mxu0 0
  %129 = vmatprep.subr.bf16.mxu0 0
  %130 = vmatpush1.bf16.msra.mxu0 0
  %131 = vmatprep.mubr.bf16.mxu0 0
  %132 = vmatmul.mubr.bf16.gmra.mrb[0].mxu0 %v27
  %v133 = vpop.f32.mrb[0].mxu0
  %v134 = vadd.f32 %v49, %v133
  %v135 = vpop.f32.mrb[0].mxu0
  %v136 = vpop.f32.mrb[0].mxu0
  %v137 = vpop.f32.mrb[0].mxu0
  %138 = vdwg.mxu0
  %v139 = vmax.f32 %v134, 0.0
  %v140 = vpack.c.bf16 %v139, %v139
  %v141 = vld [vmem:[%s3] sm:$0xff]
  %v142 = vld [vmem:[%s3 + $0x8] sm:$0xff]
  %v143 = vld [vmem:[%s3 + $0x10] sm:$0xff]
  %v144 = vld [vmem:[%s3 + $0x18] sm:$0xff]
  %v145 = vld [vmem:[%s3 + $0x20] sm:$0xff]
  %v146 = vld [vmem:[%s3 + $0x28] sm:$0xff]
  %v147 = vld [vmem:[%s3 + $0x30] sm:$0xff]
  %v148 = vld [vmem:[%s3 + $0x38] sm:$0xff]
  %v149 = vld [vmem:[%s3 + $0x40] sm:$0xff]
  %v150 = vld [vmem:[%s3 + $0x48] sm:$0xff]
  %v151 = vld [vmem:[%s3 + $0x50] sm:$0xff]
  %v152 = vld [vmem:[%s3 + $0x58] sm:$0xff]
  %v153 = vld [vmem:[%s3 + $0x60] sm:$0xff]
  %v154 = vld [vmem:[%s3 + $0x68] sm:$0xff]
  %v155 = vld [vmem:[%s3 + $0x70] sm:$0xff]
  %v156 = vld [vmem:[%s3 + $0x78] sm:$0xff]
  %v157 = vld [vmem:[%s4] sm:$0x3]
  %v159 = vlaneseq
  %v160 = vshrl.u32 %v159, 7
  %v161 = vsub.s32 0, %v160
  %v162 = vrot.slane %v157, %v161
  %v163 = vlaneseq
  %v164 = vshrl.u32 %v163, 7
  %v165 = vsub.s32 1, %v164
  %v166 = vrot.slane %v157, %v165
  %v185 = vunpack.c.l.b16 %v141
  %v186 = vunpack.c.h.b16 %v141
  %v187 = vunpack.c.l.b16 %v142
  %v188 = vunpack.c.h.b16 %v142
  %v189 = vunpack.c.l.b16 %v143
  %v190 = vunpack.c.h.b16 %v143
  %v191 = vunpack.c.l.b16 %v144
  %v192 = vunpack.c.h.b16 %v144
  %v193 = vunpack.c.l.b16 %v145
  %v194 = vunpack.c.h.b16 %v145
  %v195 = vunpack.c.l.b16 %v146
  %v196 = vunpack.c.h.b16 %v146
  %v197 = vunpack.c.l.b16 %v147
  %v198 = vunpack.c.h.b16 %v147
  %v199 = vunpack.c.l.b16 %v148
  %v200 = vunpack.c.h.b16 %v148
  %v201 = vunpack.c.l.b16 %v149
  %v202 = vunpack.c.h.b16 %v149
  %v203 = vunpack.c.l.b16 %v150
  %v204 = vunpack.c.h.b16 %v150
  %v205 = vunpack.c.l.b16 %v151
  %v206 = vunpack.c.h.b16 %v151
  %v207 = vunpack.c.l.b16 %v152
  %v208 = vunpack.c.h.b16 %v152
  %v209 = vunpack.c.l.b16 %v153
  %v210 = vunpack.c.h.b16 %v153
  %v211 = vunpack.c.l.b16 %v154
  %v212 = vunpack.c.h.b16 %v154
  %v213 = vunpack.c.l.b16 %v155
  %v214 = vunpack.c.h.b16 %v155
  %v215 = vunpack.c.l.b16 %v156
  %v216 = vunpack.c.h.b16 %v156
  %v217 = vpack.c.b16 %v187, %v185
  %v218 = vpack.c.b16 %v188, %v186
  %v219 = vpack.c.b16 %v191, %v189
  %v220 = vpack.c.b16 %v192, %v190
  %v221 = vpack.c.b16 %v195, %v193
  %v222 = vpack.c.b16 %v196, %v194
  %v223 = vpack.c.b16 %v199, %v197
  %v224 = vpack.c.b16 %v200, %v198
  %v225 = vpack.c.b16 %v203, %v201
  %v226 = vpack.c.b16 %v204, %v202
  %v227 = vpack.c.b16 %v207, %v205
  %v228 = vpack.c.b16 %v208, %v206
  %v229 = vpack.c.b16 %v211, %v209
  %v230 = vpack.c.b16 %v212, %v210
  %v231 = vpack.c.b16 %v215, %v213
  %v232 = vpack.c.b16 %v216, %v214
  %249 = vmatprep.subr.bf16.mxu0 %v218
  %250 = vmatpush1.bf16.msra.mxu0 %v217
  %251 = vmatprep.subr.bf16.mxu0 %v220
  %252 = vmatpush1.bf16.msra.mxu0 %v219
  %253 = vmatprep.subr.bf16.mxu0 %v222
  %254 = vmatpush1.bf16.msra.mxu0 %v221
  %255 = vmatprep.subr.bf16.mxu0 %v224
  %256 = vmatpush1.bf16.msra.mxu0 %v223
  %257 = vmatprep.subr.bf16.mxu0 %v226
  %258 = vmatpush1.bf16.msra.mxu0 %v225
  %259 = vmatprep.subr.bf16.mxu0 %v228
  %260 = vmatpush1.bf16.msra.mxu0 %v227
  %261 = vmatprep.subr.bf16.mxu0 %v230
  %262 = vmatpush1.bf16.msra.mxu0 %v229
  %263 = vmatprep.subr.bf16.mxu0 %v232
  %264 = vmatpush1.bf16.msra.mxu0 %v231
  %265 = vmatprep.subr.bf16.mxu0 0
  %266 = vmatpush1.bf16.msra.mxu0 0
  %267 = vmatprep.subr.bf16.mxu0 0
  %268 = vmatpush1.bf16.msra.mxu0 0
  %269 = vmatprep.subr.bf16.mxu0 0
  %270 = vmatpush1.bf16.msra.mxu0 0
  %271 = vmatprep.subr.bf16.mxu0 0
  %272 = vmatpush1.bf16.msra.mxu0 0
  %273 = vmatprep.subr.bf16.mxu0 0
  %274 = vmatpush1.bf16.msra.mxu0 0
  %275 = vmatprep.subr.bf16.mxu0 0
  %276 = vmatpush1.bf16.msra.mxu0 0
  %277 = vmatprep.subr.bf16.mxu0 0
  %278 = vmatpush1.bf16.msra.mxu0 0
  %279 = vmatprep.subr.bf16.mxu0 0
  %280 = vmatpush1.bf16.msra.mxu0 0
  %281 = vmatprep.mubr.bf16.mxu0 0
  %282 = vmatmul.mubr.bf16.gmra.mrb[0].mxu0 %v140
  %v283 = vpop.f32.mrb[0].mxu0
  %v284 = vadd.f32 %v162, %v283
  %v285 = vpop.f32.mrb[0].mxu0
  %v286 = vadd.f32 %v166, %v285
  %v287 = vpop.f32.mrb[0].mxu0
  %v288 = vpop.f32.mrb[0].mxu0
  %289 = vdwg.mxu0
  %v290 = vmax.f32 %v284, 0.0
  %v291 = vmax.f32 %v286, 0.0
  %v292 = vpack.c.bf16 %v290, %v290
  %v293 = vpack.c.bf16 %v291, %v291
  %v294 = vld [vmem:[%s5] sm:$0xff]
  %v295 = vld [vmem:[%s5 + $0x8] sm:$0xff]
  %v296 = vld [vmem:[%s5 + $0x10] sm:$0xff]
  %v297 = vld [vmem:[%s5 + $0x18] sm:$0xf]
  %v298 = vld [vmem:[%s5 + $0x1c] sm:$0xff]
  %v299 = vld [vmem:[%s5 + $0x24] sm:$0xff]
  %v300 = vld [vmem:[%s5 + $0x2c] sm:$0xff]
  %v301 = vld [vmem:[%s5 + $0x34] sm:$0xf]
  %v302 = vld [vmem:[%s5 + $0x38] sm:$0xff]
  %v303 = vld [vmem:[%s5 + $0x40] sm:$0xff]
  %v304 = vld [vmem:[%s5 + $0x48] sm:$0xff]
  %v305 = vld [vmem:[%s5 + $0x50] sm:$0xf]
  %v306 = vld [vmem:[%s5 + $0x54] sm:$0xff]
  %v307 = vld [vmem:[%s5 + $0x5c] sm:$0xff]
  %v308 = vld [vmem:[%s5 + $0x64] sm:$0xff]
  %v309 = vld [vmem:[%s5 + $0x6c] sm:$0xf]
  %v310 = vld [vmem:[%s5 + $0x70] sm:$0xff]
  %v311 = vld [vmem:[%s5 + $0x78] sm:$0xff]
  %v312 = vld [vmem:[%s5 + $0x80] sm:$0xff]
  %v313 = vld [vmem:[%s5 + $0x88] sm:$0xf]
  %v314 = vld [vmem:[%s5 + $0x8c] sm:$0xff]
  %v315 = vld [vmem:[%s5 + $0x94] sm:$0xff]
  %v316 = vld [vmem:[%s5 + $0x9c] sm:$0xff]
  %v317 = vld [vmem:[%s5 + $0xa4] sm:$0xf]
  %v318 = vld [vmem:[%s5 + $0xa8] sm:$0xff]
  %v319 = vld [vmem:[%s5 + $0xb0] sm:$0xff]
  %v320 = vld [vmem:[%s5 + $0xb8] sm:$0xff]
  %v321 = vld [vmem:[%s5 + $0xc0] sm:$0xf]
  %v322 = vld [vmem:[%s5 + $0xc4] sm:$0xff]
  %v323 = vld [vmem:[%s5 + $0xcc] sm:$0xff]
  %v324 = vld [vmem:[%s5 + $0xd4] sm:$0xff]
  %v325 = vld [vmem:[%s5 + $0xdc] sm:$0xf]
  %v326 = vld [vmem:[%s5 + $0xe0] sm:$0xff]
  %v327 = vld [vmem:[%s5 + $0xe8] sm:$0xff]
  %v328 = vld [vmem:[%s5 + $0xf0] sm:$0xff]
  %v329 = vld [vmem:[%s5 + $0xf8] sm:$0xf]
  %v330 = vld [vmem:[%s5 + $0xfc] sm:$0xff]
  %v331 = vld [vmem:[%s5 + $0x104] sm:$0xff]
  %v332 = vld [vmem:[%s5 + $0x10c] sm:$0xff]
  %v333 = vld [vmem:[%s5 + $0x114] sm:$0xf]
  %v334 = vld [vmem:[%s5 + $0x118] sm:$0xff]
  %v335 = vld [vmem:[%s5 + $0x120] sm:$0xff]
  %v336 = vld [vmem:[%s5 + $0x128] sm:$0xff]
  %v337 = vld [vmem:[%s5 + $0x130] sm:$0xf]
  %v338 = vld [vmem:[%s5 + $0x134] sm:$0xff]
  %v339 = vld [vmem:[%s5 + $0x13c] sm:$0xff]
  %v340 = vld [vmem:[%s5 + $0x144] sm:$0xff]
  %v341 = vld [vmem:[%s5 + $0x14c] sm:$0xf]
  %v342 = vld [vmem:[%s5 + $0x150] sm:$0xff]
  %v343 = vld [vmem:[%s5 + $0x158] sm:$0xff]
  %v344 = vld [vmem:[%s5 + $0x160] sm:$0xff]
  %v345 = vld [vmem:[%s5 + $0x168] sm:$0xf]
  %v346 = vld [vmem:[%s5 + $0x16c] sm:$0xff]
  %v347 = vld [vmem:[%s5 + $0x174] sm:$0xff]
  %v348 = vld [vmem:[%s5 + $0x17c] sm:$0xff]
  %v349 = vld [vmem:[%s5 + $0x184] sm:$0xf]
  %v350 = vld [vmem:[%s5 + $0x188] sm:$0xff]
  %v351 = vld [vmem:[%s5 + $0x190] sm:$0xff]
  %v352 = vld [vmem:[%s5 + $0x198] sm:$0xff]
  %v353 = vld [vmem:[%s5 + $0x1a0] sm:$0xf]
  %v354 = vld [vmem:[%s5 + $0x1a4] sm:$0xff]
  %v355 = vld [vmem:[%s5 + $0x1ac] sm:$0xff]
  %v356 = vld [vmem:[%s5 + $0x1b4] sm:$0xff]
  %v357 = vld [vmem:[%s5 + $0x1bc] sm:$0xf]
  %v358 = vld [vmem:[%s5 + $0x1c0] sm:$0xff]
  %v359 = vld [vmem:[%s5 + $0x1c8] sm:$0xff]
  %v360 = vld [vmem:[%s5 + $0x1d0] sm:$0xff]
  %v361 = vld [vmem:[%s5 + $0x1d8] sm:$0xf]
  %v362 = vld [vmem:[%s5 + $0x1dc] sm:$0xff]
  %v363 = vld [vmem:[%s5 + $0x1e4] sm:$0xff]
  %v364 = vld [vmem:[%s5 + $0x1ec] sm:$0xff]
  %v365 = vld [vmem:[%s5 + $0x1f4] sm:$0xf]
  %v366 = vld [vmem:[%s5 + $0x1f8] sm:$0xff]
  %v367 = vld [vmem:[%s5 + $0x200] sm:$0xff]
  %v368 = vld [vmem:[%s5 + $0x208] sm:$0xff]
  %v369 = vld [vmem:[%s5 + $0x210] sm:$0xf]
  %v370 = vld [vmem:[%s5 + $0x214] sm:$0xff]
  %v371 = vld [vmem:[%s5 + $0x21c] sm:$0xff]
  %v372 = vld [vmem:[%s5 + $0x224] sm:$0xff]
  %v373 = vld [vmem:[%s5 + $0x22c] sm:$0xf]
  %v374 = vld [vmem:[%s5 + $0x230] sm:$0xff]
  %v375 = vld [vmem:[%s5 + $0x238] sm:$0xff]
  %v376 = vld [vmem:[%s5 + $0x240] sm:$0xff]
  %v377 = vld [vmem:[%s5 + $0x248] sm:$0xf]
  %v378 = vld [vmem:[%s5 + $0x24c] sm:$0xff]
  %v379 = vld [vmem:[%s5 + $0x254] sm:$0xff]
  %v380 = vld [vmem:[%s5 + $0x25c] sm:$0xff]
  %v381 = vld [vmem:[%s5 + $0x264] sm:$0xf]
  %v382 = vld [vmem:[%s5 + $0x268] sm:$0xff]
  %v383 = vld [vmem:[%s5 + $0x270] sm:$0xff]
  %v384 = vld [vmem:[%s5 + $0x278] sm:$0xff]
  %v385 = vld [vmem:[%s5 + $0x280] sm:$0xf]
  %v386 = vld [vmem:[%s5 + $0x284] sm:$0xff]
  %v387 = vld [vmem:[%s5 + $0x28c] sm:$0xff]
  %v388 = vld [vmem:[%s5 + $0x294] sm:$0xff]
  %v389 = vld [vmem:[%s5 + $0x29c] sm:$0xf]
  %v390 = vld [vmem:[%s5 + $0x2a0] sm:$0xff]
  %v391 = vld [vmem:[%s5 + $0x2a8] sm:$0xff]
  %v392 = vld [vmem:[%s5 + $0x2b0] sm:$0xff]
  %v393 = vld [vmem:[%s5 + $0x2b8] sm:$0xf]
  %v394 = vld [vmem:[%s5 + $0x2bc] sm:$0xff]
  %v395 = vld [vmem:[%s5 + $0x2c4] sm:$0xff]
  %v396 = vld [vmem:[%s5 + $0x2cc] sm:$0xff]
  %v397 = vld [vmem:[%s5 + $0x2d4] sm:$0xf]
  %v398 = vld [vmem:[%s5 + $0x2d8] sm:$0xff]
  %v399 = vld [vmem:[%s5 + $0x2e0] sm:$0xff]
  %v400 = vld [vmem:[%s5 + $0x2e8] sm:$0xff]
  %v401 = vld [vmem:[%s5 + $0x2f0] sm:$0xf]
  %v402 = vld [vmem:[%s5 + $0x2f4] sm:$0xff]
  %v403 = vld [vmem:[%s5 + $0x2fc] sm:$0xff]
  %v404 = vld [vmem:[%s5 + $0x304] sm:$0xff]
  %v405 = vld [vmem:[%s5 + $0x30c] sm:$0xf]
  %v406 = vld [vmem:[%s5 + $0x310] sm:$0xff]
  %v407 = vld [vmem:[%s5 + $0x318] sm:$0xff]
  %v408 = vld [vmem:[%s5 + $0x320] sm:$0xff]
  %v409 = vld [vmem:[%s5 + $0x328] sm:$0xf]
  %v410 = vld [vmem:[%s5 + $0x32c] sm:$0xff]
  %v411 = vld [vmem:[%s5 + $0x334] sm:$0xff]
  %v412 = vld [vmem:[%s5 + $0x33c] sm:$0xff]
  %v413 = vld [vmem:[%s5 + $0x344] sm:$0xf]
  %v414 = vld [vmem:[%s5 + $0x348] sm:$0xff]
  %v415 = vld [vmem:[%s5 + $0x350] sm:$0xff]
  %v416 = vld [vmem:[%s5 + $0x358] sm:$0xff]
  %v417 = vld [vmem:[%s5 + $0x360] sm:$0xf]
  %v418 = vld [vmem:[%s5 + $0x364] sm:$0xff]
  %v419 = vld [vmem:[%s5 + $0x36c] sm:$0xff]
  %v420 = vld [vmem:[%s5 + $0x374] sm:$0xff]
  %v421 = vld [vmem:[%s5 + $0x37c] sm:$0xf]
  %v422 = vld [vmem:[%s6] sm:$0x7f]
  %v424 = vlaneseq
  %v425 = vshrl.u32 %v424, 7
  %v426 = vsub.s32 0, %v425
  %v427 = vrot.slane %v422, %v426
  %v428 = vlaneseq
  %v429 = vshrl.u32 %v428, 7
  %v430 = vsub.s32 1, %v429
  %v431 = vrot.slane %v422, %v430
  %v432 = vlaneseq
  %v433 = vshrl.u32 %v432, 7
  %v434 = vsub.s32 2, %v433
  %v435 = vrot.slane %v422, %v434
  %v436 = vlaneseq
  %v437 = vshrl.u32 %v436, 7
  %v438 = vsub.s32 3, %v437
  %v439 = vrot.slane %v422, %v438
  %v440 = vlaneseq
  %v441 = vshrl.u32 %v440, 7
  %v442 = vsub.s32 4, %v441
  %v443 = vrot.slane %v422, %v442
  %v444 = vlaneseq
  %v445 = vshrl.u32 %v444, 7
  %v446 = vsub.s32 5, %v445
  %v447 = vrot.slane %v422, %v446
  %v448 = vlaneseq
  %v449 = vshrl.u32 %v448, 7
  %v450 = vsub.s32 6, %v449
  %v451 = vrot.slane %v422, %v450
  %v587 = vunpack.c.l.b16 %v294
  %v588 = vunpack.c.h.b16 %v294
  %v589 = vunpack.c.l.b16 %v295
  %v590 = vunpack.c.h.b16 %v295
  %v591 = vunpack.c.l.b16 %v296
  %v592 = vunpack.c.h.b16 %v296
  %v593 = vunpack.c.l.b16 %v297
  %v594 = vunpack.c.l.b16 %v298
  %v595 = vunpack.c.h.b16 %v298
  %v596 = vunpack.c.l.b16 %v299
  %v597 = vunpack.c.h.b16 %v299
  %v598 = vunpack.c.l.b16 %v300
  %v599 = vunpack.c.h.b16 %v300
  %v600 = vunpack.c.l.b16 %v301
  %v601 = vunpack.c.l.b16 %v302
  %v602 = vunpack.c.h.b16 %v302
  %v603 = vunpack.c.l.b16 %v303
  %v604 = vunpack.c.h.b16 %v303
  %v605 = vunpack.c.l.b16 %v304
  %v606 = vunpack.c.h.b16 %v304
  %v607 = vunpack.c.l.b16 %v305
  %v608 = vunpack.c.l.b16 %v306
  %v609 = vunpack.c.h.b16 %v306
  %v610 = vunpack.c.l.b16 %v307
  %v611 = vunpack.c.h.b16 %v307
  %v612 = vunpack.c.l.b16 %v308
  %v613 = vunpack.c.h.b16 %v308
  %v614 = vunpack.c.l.b16 %v309
  %v615 = vunpack.c.l.b16 %v310
  %v616 = vunpack.c.h.b16 %v310
  %v617 = vunpack.c.l.b16 %v311
  %v618 = vunpack.c.h.b16 %v311
  %v619 = vunpack.c.l.b16 %v312
  %v620 = vunpack.c.h.b16 %v312
  %v621 = vunpack.c.l.b16 %v313
  %v622 = vunpack.c.l.b16 %v314
  %v623 = vunpack.c.h.b16 %v314
  %v624 = vunpack.c.l.b16 %v315
  %v625 = vunpack.c.h.b16 %v315
  %v626 = vunpack.c.l.b16 %v316
  %v627 = vunpack.c.h.b16 %v316
  %v628 = vunpack.c.l.b16 %v317
  %v629 = vunpack.c.l.b16 %v318
  %v630 = vunpack.c.h.b16 %v318
  %v631 = vunpack.c.l.b16 %v319
  %v632 = vunpack.c.h.b16 %v319
  %v633 = vunpack.c.l.b16 %v320
  %v634 = vunpack.c.h.b16 %v320
  %v635 = vunpack.c.l.b16 %v321
  %v636 = vunpack.c.l.b16 %v322
  %v637 = vunpack.c.h.b16 %v322
  %v638 = vunpack.c.l.b16 %v323
  %v639 = vunpack.c.h.b16 %v323
  %v640 = vunpack.c.l.b16 %v324
  %v641 = vunpack.c.h.b16 %v324
  %v642 = vunpack.c.l.b16 %v325
  %v643 = vunpack.c.l.b16 %v326
  %v644 = vunpack.c.h.b16 %v326
  %v645 = vunpack.c.l.b16 %v327
  %v646 = vunpack.c.h.b16 %v327
  %v647 = vunpack.c.l.b16 %v328
  %v648 = vunpack.c.h.b16 %v328
  %v649 = vunpack.c.l.b16 %v329
  %v650 = vunpack.c.l.b16 %v330
  %v651 = vunpack.c.h.b16 %v330
  %v652 = vunpack.c.l.b16 %v331
  %v653 = vunpack.c.h.b16 %v331
  %v654 = vunpack.c.l.b16 %v332
  %v655 = vunpack.c.h.b16 %v332
  %v656 = vunpack.c.l.b16 %v333
  %v657 = vunpack.c.l.b16 %v334
  %v658 = vunpack.c.h.b16 %v334
  %v659 = vunpack.c.l.b16 %v335
  %v660 = vunpack.c.h.b16 %v335
  %v661 = vunpack.c.l.b16 %v336
  %v662 = vunpack.c.h.b16 %v336
  %v663 = vunpack.c.l.b16 %v337
  %v664 = vunpack.c.l.b16 %v338
  %v665 = vunpack.c.h.b16 %v338
  %v666 = vunpack.c.l.b16 %v339
  %v667 = vunpack.c.h.b16 %v339
  %v668 = vunpack.c.l.b16 %v340
  %v669 = vunpack.c.h.b16 %v340
  %v670 = vunpack.c.l.b16 %v341
  %v671 = vunpack.c.l.b16 %v342
  %v672 = vunpack.c.h.b16 %v342
  %v673 = vunpack.c.l.b16 %v343
  %v674 = vunpack.c.h.b16 %v343
  %v675 = vunpack.c.l.b16 %v344
  %v676 = vunpack.c.h.b16 %v344
  %v677 = vunpack.c.l.b16 %v345
  %v678 = vunpack.c.l.b16 %v346
  %v679 = vunpack.c.h.b16 %v346
  %v680 = vunpack.c.l.b16 %v347
  %v681 = vunpack.c.h.b16 %v347
  %v682 = vunpack.c.l.b16 %v348
  %v683 = vunpack.c.h.b16 %v348
  %v684 = vunpack.c.l.b16 %v349
  %v685 = vunpack.c.l.b16 %v350
  %v686 = vunpack.c.h.b16 %v350
  %v687 = vunpack.c.l.b16 %v351
  %v688 = vunpack.c.h.b16 %v351
  %v689 = vunpack.c.l.b16 %v352
  %v690 = vunpack.c.h.b16 %v352
  %v691 = vunpack.c.l.b16 %v353
  %v692 = vunpack.c.l.b16 %v354
  %v693 = vunpack.c.h.b16 %v354
  %v694 = vunpack.c.l.b16 %v355
  %v695 = vunpack.c.h.b16 %v355
  %v696 = vunpack.c.l.b16 %v356
  %v697 = vunpack.c.h.b16 %v356
  %v698 = vunpack.c.l.b16 %v357
  %v699 = vunpack.c.l.b16 %v358
  %v700 = vunpack.c.h.b16 %v358
  %v701 = vunpack.c.l.b16 %v359
  %v702 = vunpack.c.h.b16 %v359
  %v703 = vunpack.c.l.b16 %v360
  %v704 = vunpack.c.h.b16 %v360
  %v705 = vunpack.c.l.b16 %v361
  %v706 = vunpack.c.l.b16 %v362
  %v707 = vunpack.c.h.b16 %v362
  %v708 = vunpack.c.l.b16 %v363
  %v709 = vunpack.c.h.b16 %v363
  %v710 = vunpack.c.l.b16 %v364
  %v711 = vunpack.c.h.b16 %v364
  %v712 = vunpack.c.l.b16 %v365
  %v713 = vunpack.c.l.b16 %v366
  %v714 = vunpack.c.h.b16 %v366
  %v715 = vunpack.c.l.b16 %v367
  %v716 = vunpack.c.h.b16 %v367
  %v717 = vunpack.c.l.b16 %v368
  %v718 = vunpack.c.h.b16 %v368
  %v719 = vunpack.c.l.b16 %v369
  %v720 = vunpack.c.l.b16 %v370
  %v721 = vunpack.c.h.b16 %v370
  %v722 = vunpack.c.l.b16 %v371
  %v723 = vunpack.c.h.b16 %v371
  %v724 = vunpack.c.l.b16 %v372
  %v725 = vunpack.c.h.b16 %v372
  %v726 = vunpack.c.l.b16 %v373
  %v727 = vunpack.c.l.b16 %v374
  %v728 = vunpack.c.h.b16 %v374
  %v729 = vunpack.c.l.b16 %v375
  %v730 = vunpack.c.h.b16 %v375
  %v731 = vunpack.c.l.b16 %v376
  %v732 = vunpack.c.h.b16 %v376
  %v733 = vunpack.c.l.b16 %v377
  %v734 = vunpack.c.l.b16 %v378
  %v735 = vunpack.c.h.b16 %v378
  %v736 = vunpack.c.l.b16 %v379
  %v737 = vunpack.c.h.b16 %v379
  %v738 = vunpack.c.l.b16 %v380
  %v739 = vunpack.c.h.b16 %v380
  %v740 = vunpack.c.l.b16 %v381
  %v741 = vunpack.c.l.b16 %v382
  %v742 = vunpack.c.h.b16 %v382
  %v743 = vunpack.c.l.b16 %v383
  %v744 = vunpack.c.h.b16 %v383
  %v745 = vunpack.c.l.b16 %v384
  %v746 = vunpack.c.h.b16 %v384
  %v747 = vunpack.c.l.b16 %v385
  %v748 = vunpack.c.l.b16 %v386
  %v749 = vunpack.c.h.b16 %v386
  %v750 = vunpack.c.l.b16 %v387
  %v751 = vunpack.c.h.b16 %v387
  %v752 = vunpack.c.l.b16 %v388
  %v753 = vunpack.c.h.b16 %v388
  %v754 = vunpack.c.l.b16 %v389
  %v755 = vunpack.c.l.b16 %v390
  %v756 = vunpack.c.h.b16 %v390
  %v757 = vunpack.c.l.b16 %v391
  %v758 = vunpack.c.h.b16 %v391
  %v759 = vunpack.c.l.b16 %v392
  %v760 = vunpack.c.h.b16 %v392
  %v761 = vunpack.c.l.b16 %v393
  %v762 = vunpack.c.l.b16 %v394
  %v763 = vunpack.c.h.b16 %v394
  %v764 = vunpack.c.l.b16 %v395
  %v765 = vunpack.c.h.b16 %v395
  %v766 = vunpack.c.l.b16 %v396
  %v767 = vunpack.c.h.b16 %v396
  %v768 = vunpack.c.l.b16 %v397
  %v769 = vunpack.c.l.b16 %v398
  %v770 = vunpack.c.h.b16 %v398
  %v771 = vunpack.c.l.b16 %v399
  %v772 = vunpack.c.h.b16 %v399
  %v773 = vunpack.c.l.b16 %v400
  %v774 = vunpack.c.h.b16 %v400
  %v775 = vunpack.c.l.b16 %v401
  %v776 = vunpack.c.l.b16 %v402
  %v777 = vunpack.c.h.b16 %v402
  %v778 = vunpack.c.l.b16 %v403
  %v779 = vunpack.c.h.b16 %v403
  %v780 = vunpack.c.l.b16 %v404
  %v781 = vunpack.c.h.b16 %v404
  %v782 = vunpack.c.l.b16 %v405
  %v783 = vunpack.c.l.b16 %v406
  %v784 = vunpack.c.h.b16 %v406
  %v785 = vunpack.c.l.b16 %v407
  %v786 = vunpack.c.h.b16 %v407
  %v787 = vunpack.c.l.b16 %v408
  %v788 = vunpack.c.h.b16 %v408
  %v789 = vunpack.c.l.b16 %v409
  %v790 = vunpack.c.l.b16 %v410
  %v791 = vunpack.c.h.b16 %v410
  %v792 = vunpack.c.l.b16 %v411
  %v793 = vunpack.c.h.b16 %v411
  %v794 = vunpack.c.l.b16 %v412
  %v795 = vunpack.c.h.b16 %v412
  %v796 = vunpack.c.l.b16 %v413
  %v797 = vunpack.c.l.b16 %v414
  %v798 = vunpack.c.h.b16 %v414
  %v799 = vunpack.c.l.b16 %v415
  %v800 = vunpack.c.h.b16 %v415
  %v801 = vunpack.c.l.b16 %v416
  %v802 = vunpack.c.h.b16 %v416
  %v803 = vunpack.c.l.b16 %v417
  %v804 = vunpack.c.l.b16 %v418
  %v805 = vunpack.c.h.b16 %v418
  %v806 = vunpack.c.l.b16 %v419
  %v807 = vunpack.c.h.b16 %v419
  %v808 = vunpack.c.l.b16 %v420
  %v809 = vunpack.c.h.b16 %v420
  %v810 = vunpack.c.l.b16 %v421
  %v811 = vpack.c.b16 %v594, %v587
  %v812 = vpack.c.b16 %v595, %v588
  %v813 = vpack.c.b16 %v596, %v589
  %v814 = vpack.c.b16 %v597, %v590
  %v815 = vpack.c.b16 %v598, %v591
  %v816 = vpack.c.b16 %v599, %v592
  %v817 = vpack.c.b16 %v600, %v593
  %v818 = vpack.c.b16 %v608, %v601
  %v819 = vpack.c.b16 %v609, %v602
  %v820 = vpack.c.b16 %v610, %v603
  %v821 = vpack.c.b16 %v611, %v604
  %v822 = vpack.c.b16 %v612, %v605
  %v823 = vpack.c.b16 %v613, %v606
  %v824 = vpack.c.b16 %v614, %v607
  %v825 = vpack.c.b16 %v622, %v615
  %v826 = vpack.c.b16 %v623, %v616
  %v827 = vpack.c.b16 %v624, %v617
  %v828 = vpack.c.b16 %v625, %v618
  %v829 = vpack.c.b16 %v626, %v619
  %v830 = vpack.c.b16 %v627, %v620
  %v831 = vpack.c.b16 %v628, %v621
  %v832 = vpack.c.b16 %v636, %v629
  %v833 = vpack.c.b16 %v637, %v630
  %v834 = vpack.c.b16 %v638, %v631
  %v835 = vpack.c.b16 %v639, %v632
  %v836 = vpack.c.b16 %v640, %v633
  %v837 = vpack.c.b16 %v641, %v634
  %v838 = vpack.c.b16 %v642, %v635
  %v839 = vpack.c.b16 %v650, %v643
  %v840 = vpack.c.b16 %v651, %v644
  %v841 = vpack.c.b16 %v652, %v645
  %v842 = vpack.c.b16 %v653, %v646
  %v843 = vpack.c.b16 %v654, %v647
  %v844 = vpack.c.b16 %v655, %v648
  %v845 = vpack.c.b16 %v656, %v649
  %v846 = vpack.c.b16 %v664, %v657
  %v847 = vpack.c.b16 %v665, %v658
  %v848 = vpack.c.b16 %v666, %v659
  %v849 = vpack.c.b16 %v667, %v660
  %v850 = vpack.c.b16 %v668, %v661
  %v851 = vpack.c.b16 %v669, %v662
  %v852 = vpack.c.b16 %v670, %v663
  %v853 = vpack.c.b16 %v678, %v671
  %v854 = vpack.c.b16 %v679, %v672
  %v855 = vpack.c.b16 %v680, %v673
  %v856 = vpack.c.b16 %v681, %v674
  %v857 = vpack.c.b16 %v682, %v675
  %v858 = vpack.c.b16 %v683, %v676
  %v859 = vpack.c.b16 %v684, %v677
  %v860 = vpack.c.b16 %v692, %v685
  %v861 = vpack.c.b16 %v693, %v686
  %v862 = vpack.c.b16 %v694, %v687
  %v863 = vpack.c.b16 %v695, %v688
  %v864 = vpack.c.b16 %v696, %v689
  %v865 = vpack.c.b16 %v697, %v690
  %v866 = vpack.c.b16 %v698, %v691
  %v867 = vpack.c.b16 %v706, %v699
  %v868 = vpack.c.b16 %v707, %v700
  %v869 = vpack.c.b16 %v708, %v701
  %v870 = vpack.c.b16 %v709, %v702
  %v871 = vpack.c.b16 %v710, %v703
  %v872 = vpack.c.b16 %v711, %v704
  %v873 = vpack.c.b16 %v712, %v705
  %v874 = vpack.c.b16 %v720, %v713
  %v875 = vpack.c.b16 %v721, %v714
  %v876 = vpack.c.b16 %v722, %v715
  %v877 = vpack.c.b16 %v723, %v716
  %v878 = vpack.c.b16 %v724, %v717
  %v879 = vpack.c.b16 %v725, %v718
  %v880 = vpack.c.b16 %v726, %v719
  %v881 = vpack.c.b16 %v734, %v727
  %v882 = vpack.c.b16 %v735, %v728
  %v883 = vpack.c.b16 %v736, %v729
  %v884 = vpack.c.b16 %v737, %v730
  %v885 = vpack.c.b16 %v738, %v731
  %v886 = vpack.c.b16 %v739, %v732
  %v887 = vpack.c.b16 %v740, %v733
  %v888 = vpack.c.b16 %v748, %v741
  %v889 = vpack.c.b16 %v749, %v742
  %v890 = vpack.c.b16 %v750, %v743
  %v891 = vpack.c.b16 %v751, %v744
  %v892 = vpack.c.b16 %v752, %v745
  %v893 = vpack.c.b16 %v753, %v746
  %v894 = vpack.c.b16 %v754, %v747
  %v895 = vpack.c.b16 %v762, %v755
  %v896 = vpack.c.b16 %v763, %v756
  %v897 = vpack.c.b16 %v764, %v757
  %v898 = vpack.c.b16 %v765, %v758
  %v899 = vpack.c.b16 %v766, %v759
  %v900 = vpack.c.b16 %v767, %v760
  %v901 = vpack.c.b16 %v768, %v761
  %v902 = vpack.c.b16 %v776, %v769
  %v903 = vpack.c.b16 %v777, %v770
  %v904 = vpack.c.b16 %v778, %v771
  %v905 = vpack.c.b16 %v779, %v772
  %v906 = vpack.c.b16 %v780, %v773
  %v907 = vpack.c.b16 %v781, %v774
  %v908 = vpack.c.b16 %v782, %v775
  %v909 = vpack.c.b16 %v790, %v783
  %v910 = vpack.c.b16 %v791, %v784
  %v911 = vpack.c.b16 %v792, %v785
  %v912 = vpack.c.b16 %v793, %v786
  %v913 = vpack.c.b16 %v794, %v787
  %v914 = vpack.c.b16 %v795, %v788
  %v915 = vpack.c.b16 %v796, %v789
  %v916 = vpack.c.b16 %v804, %v797
  %v917 = vpack.c.b16 %v805, %v798
  %v918 = vpack.c.b16 %v806, %v799
  %v919 = vpack.c.b16 %v807, %v800
  %v920 = vpack.c.b16 %v808, %v801
  %v921 = vpack.c.b16 %v809, %v802
  %v922 = vpack.c.b16 %v810, %v803
  %1035 = vmatprep.subr.bf16.mxu0 %v812
  %1036 = vmatpush1.bf16.msra.mxu0 %v811
  %1037 = vmatprep.subr.bf16.mxu0 %v819
  %1038 = vmatpush1.bf16.msra.mxu0 %v818
  %1039 = vmatprep.subr.bf16.mxu0 %v826
  %1040 = vmatpush1.bf16.msra.mxu0 %v825
  %1041 = vmatprep.subr.bf16.mxu0 %v833
  %1042 = vmatpush1.bf16.msra.mxu0 %v832
  %1043 = vmatprep.subr.bf16.mxu0 %v840
  %1044 = vmatpush1.bf16.msra.mxu0 %v839
  %1045 = vmatprep.subr.bf16.mxu0 %v847
  %1046 = vmatpush1.bf16.msra.mxu0 %v846
  %1047 = vmatprep.subr.bf16.mxu0 %v854
  %1048 = vmatpush1.bf16.msra.mxu0 %v853
  %1049 = vmatprep.subr.bf16.mxu0 %v861
  %1050 = vmatpush1.bf16.msra.mxu0 %v860
  %1051 = vmatprep.subr.bf16.mxu0 %v868
  %1052 = vmatpush1.bf16.msra.mxu0 %v867
  %1053 = vmatprep.subr.bf16.mxu0 %v875
  %1054 = vmatpush1.bf16.msra.mxu0 %v874
  %1055 = vmatprep.subr.bf16.mxu0 %v882
  %1056 = vmatpush1.bf16.msra.mxu0 %v881
  %1057 = vmatprep.subr.bf16.mxu0 %v889
  %1058 = vmatpush1.bf16.msra.mxu0 %v888
  %1059 = vmatprep.subr.bf16.mxu0 %v896
  %1060 = vmatpush1.bf16.msra.mxu0 %v895
  %1061 = vmatprep.subr.bf16.mxu0 %v903
  %1062 = vmatpush1.bf16.msra.mxu0 %v902
  %1063 = vmatprep.subr.bf16.mxu0 %v910
  %1064 = vmatpush1.bf16.msra.mxu0 %v909
  %1065 = vmatprep.subr.bf16.mxu0 %v917
  %1066 = vmatpush1.bf16.msra.mxu0 %v916
  %1067 = vmatprep.mubr.bf16.mxu0 %v293
  %1068 = vmatmul.mubr.bf16.gmra.mrb[0].mxu0 %v292
  %v1069 = vpop.f32.mrb[0].mxu0
  %v1070 = vadd.f32 %v427, %v1069
  %v1071 = vpop.f32.mrb[0].mxu0
  %v1072 = vadd.f32 %v431, %v1071
  %v1073 = vpop.f32.mrb[0].mxu0
  %v1074 = vpop.f32.mrb[0].mxu0
  %1075 = vdwg.mxu0
  %1076 = vmatprep.subr.bf16.mxu0 %v814
  %1077 = vmatpush1.bf16.msra.mxu0 %v813
  %1078 = vmatprep.subr.bf16.mxu0 %v821
  %1079 = vmatpush1.bf16.msra.mxu0 %v820
  %1080 = vmatprep.subr.bf16.mxu0 %v828
  %1081 = vmatpush1.bf16.msra.mxu0 %v827
  %1082 = vmatprep.subr.bf16.mxu0 %v835
  %1083 = vmatpush1.bf16.msra.mxu0 %v834
  %1084 = vmatprep.subr.bf16.mxu0 %v842
  %1085 = vmatpush1.bf16.msra.mxu0 %v841
  %1086 = vmatprep.subr.bf16.mxu0 %v849
  %1087 = vmatpush1.bf16.msra.mxu0 %v848
  %1088 = vmatprep.subr.bf16.mxu0 %v856
  %1089 = vmatpush1.bf16.msra.mxu0 %v855
  %1090 = vmatprep.subr.bf16.mxu0 %v863
  %1091 = vmatpush1.bf16.msra.mxu0 %v862
  %1092 = vmatprep.subr.bf16.mxu0 %v870
  %1093 = vmatpush1.bf16.msra.mxu0 %v869
  %1094 = vmatprep.subr.bf16.mxu0 %v877
  %1095 = vmatpush1.bf16.msra.mxu0 %v876
  %1096 = vmatprep.subr.bf16.mxu0 %v884
  %1097 = vmatpush1.bf16.msra.mxu0 %v883
  %1098 = vmatprep.subr.bf16.mxu0 %v891
  %1099 = vmatpush1.bf16.msra.mxu0 %v890
  %1100 = vmatprep.subr.bf16.mxu0 %v898
  %1101 = vmatpush1.bf16.msra.mxu0 %v897
  %1102 = vmatprep.subr.bf16.mxu0 %v905
  %1103 = vmatpush1.bf16.msra.mxu0 %v904
  %1104 = vmatprep.subr.bf16.mxu0 %v912
  %1105 = vmatpush1.bf16.msra.mxu0 %v911
  %1106 = vmatprep.subr.bf16.mxu0 %v919
  %1107 = vmatpush1.bf16.msra.mxu0 %v918
  %1108 = vmatprep.mubr.bf16.mxu0 %v293
  %1109 = vmatmul.mubr.bf16.gmra.mrb[0].mxu0 %v292
  %v1110 = vpop.f32.mrb[0].mxu0
  %v1111 = vadd.f32 %v435, %v1110
  %v1112 = vpop.f32.mrb[0].mxu0
  %v1113 = vadd.f32 %v439, %v1112
  %v1114 = vpop.f32.mrb[0].mxu0
  %v1115 = vpop.f32.mrb[0].mxu0
  %1116 = vdwg.mxu0
  %1117 = vmatprep.subr.bf16.mxu0 %v816
  %1118 = vmatpush1.bf16.msra.mxu0 %v815
  %1119 = vmatprep.subr.bf16.mxu0 %v823
  %1120 = vmatpush1.bf16.msra.mxu0 %v822
  %1121 = vmatprep.subr.bf16.mxu0 %v830
  %1122 = vmatpush1.bf16.msra.mxu0 %v829
  %1123 = vmatprep.subr.bf16.mxu0 %v837
  %1124 = vmatpush1.bf16.msra.mxu0 %v836
  %1125 = vmatprep.subr.bf16.mxu0 %v844
  %1126 = vmatpush1.bf16.msra.mxu0 %v843
  %1127 = vmatprep.subr.bf16.mxu0 %v851
  %1128 = vmatpush1.bf16.msra.mxu0 %v850
  %1129 = vmatprep.subr.bf16.mxu0 %v858
  %1130 = vmatpush1.bf16.msra.mxu0 %v857
  %1131 = vmatprep.subr.bf16.mxu0 %v865
  %1132 = vmatpush1.bf16.msra.mxu0 %v864
  %1133 = vmatprep.subr.bf16.mxu0 %v872
  %1134 = vmatpush1.bf16.msra.mxu0 %v871
  %1135 = vmatprep.subr.bf16.mxu0 %v879
  %1136 = vmatpush1.bf16.msra.mxu0 %v878
  %1137 = vmatprep.subr.bf16.mxu0 %v886
  %1138 = vmatpush1.bf16.msra.mxu0 %v885
  %1139 = vmatprep.subr.bf16.mxu0 %v893
  %1140 = vmatpush1.bf16.msra.mxu0 %v892
  %1141 = vmatprep.subr.bf16.mxu0 %v900
  %1142 = vmatpush1.bf16.msra.mxu0 %v899
  %1143 = vmatprep.subr.bf16.mxu0 %v907
  %1144 = vmatpush1.bf16.msra.mxu0 %v906
  %1145 = vmatprep.subr.bf16.mxu0 %v914
  %1146 = vmatpush1.bf16.msra.mxu0 %v913
  %1147 = vmatprep.subr.bf16.mxu0 %v921
  %1148 = vmatpush1.bf16.msra.mxu0 %v920
  %1149 = vmatprep.mubr.bf16.mxu0 %v293
  %1150 = vmatmul.mubr.bf16.gmra.mrb[0].mxu0 %v292
  %v1151 = vpop.f32.mrb[0].mxu0
  %v1152 = vadd.f32 %v443, %v1151
  %v1153 = vpop.f32.mrb[0].mxu0
  %v1154 = vadd.f32 %v447, %v1153
  %v1155 = vpop.f32.mrb[0].mxu0
  %v1156 = vpop.f32.mrb[0].mxu0
  %1157 = vdwg.mxu0
  %1158 = vmatprep.subr.bf16.mxu0 0
  %1159 = vmatpush1.bf16.msra.mxu0 %v817
  %1160 = vmatprep.subr.bf16.mxu0 0
  %1161 = vmatpush1.bf16.msra.mxu0 %v824
  %1162 = vmatprep.subr.bf16.mxu0 0
  %1163 = vmatpush1.bf16.msra.mxu0 %v831
  %1164 = vmatprep.subr.bf16.mxu0 0
  %1165 = vmatpush1.bf16.msra.mxu0 %v838
  %1166 = vmatprep.subr.bf16.mxu0 0
  %1167 = vmatpush1.bf16.msra.mxu0 %v845
  %1168 = vmatprep.subr.bf16.mxu0 0
  %1169 = vmatpush1.bf16.msra.mxu0 %v852
  %1170 = vmatprep.subr.bf16.mxu0 0
  %1171 = vmatpush1.bf16.msra.mxu0 %v859
  %1172 = vmatprep.subr.bf16.mxu0 0
  %1173 = vmatpush1.bf16.msra.mxu0 %v866
  %1174 = vmatprep.subr.bf16.mxu0 0
  %1175 = vmatpush1.bf16.msra.mxu0 %v873
  %1176 = vmatprep.subr.bf16.mxu0 0
  %1177 = vmatpush1.bf16.msra.mxu0 %v880
  %1178 = vmatprep.subr.bf16.mxu0 0
  %1179 = vmatpush1.bf16.msra.mxu0 %v887
  %1180 = vmatprep.subr.bf16.mxu0 0
  %1181 = vmatpush1.bf16.msra.mxu0 %v894
  %1182 = vmatprep.subr.bf16.mxu0 0
  %1183 = vmatpush1.bf16.msra.mxu0 %v901
  %1184 = vmatprep.subr.bf16.mxu0 0
  %1185 = vmatpush1.bf16.msra.mxu0 %v908
  %1186 = vmatprep.subr.bf16.mxu0 0
  %1187 = vmatpush1.bf16.msra.mxu0 %v915
  %1188 = vmatprep.subr.bf16.mxu0 0
  %1189 = vmatpush1.bf16.msra.mxu0 %v922
  %1190 = vmatprep.mubr.bf16.mxu0 %v293
  %1191 = vmatmul.mubr.bf16.gmra.mrb[0].mxu0 %v292
  %v1192 = vpop.f32.mrb[0].mxu0
  %v1193 = vadd.f32 %v451, %v1192
  %v1194 = vpop.f32.mrb[0].mxu0
  %v1195 = vpop.f32.mrb[0].mxu0
  %v1196 = vpop.f32.mrb[0].mxu0
  %1197 = vdwg.mxu0
  %v1198 = vtanh.pop %v1070
  %v1199 = vtanh.pop %v1072
  %v1200 = vtanh.pop %v1111
  %v1201 = vtanh.pop %v1113
  %v1202 = vtanh.pop %v1152
  %v1203 = vtanh.pop %v1154
  %v1204 = vtanh.pop %v1193
  %v1205 = vpack.c.bf16 %v1198, %v1198
  %v1206 = vpack.c.bf16 %v1199, %v1199
  %v1207 = vpack.c.bf16 %v1200, %v1200
  %v1208 = vpack.c.bf16 %v1201, %v1201
  %v1209 = vpack.c.bf16 %v1202, %v1202
  %v1210 = vpack.c.bf16 %v1203, %v1203
  %v1211 = vpack.c.bf16 %v1204, %v1204
  %v1219 = vunpack.c.l.b16 %v1205
  %v1220 = vunpack.c.l.b16 %v1206
  %v1221 = vunpack.c.l.b16 %v1207
  %v1222 = vunpack.c.l.b16 %v1208
  %v1223 = vunpack.c.l.b16 %v1209
  %v1224 = vunpack.c.l.b16 %v1210
  %v1225 = vunpack.c.l.b16 %v1211
  %v1226 = vpack.c.b16 %v1220, %v1219
  %v1227 = vpack.c.b16 %v1222, %v1221
  %v1228 = vpack.c.b16 %v1224, %v1223
  %v1229 = vpack.c.b16 %v1225, %v1225
  %1234 = vst [vmem:[%s7] sm:$0xff] %v1226
  %1235 = vst [vmem:[%s7 + $0x8] sm:$0xff] %v1227
  %1236 = vst [vmem:[%s7 + $0x10] sm:$0xff] %v1228
  %vm1237 = vcmask 125952
  %1238 = vst.msk [vmem:[%s7 + $0x18] sm:$0xf] %vm1237, %v1229
  // Predicated region
  $region30: #{generator_forward.1} parent=0 // pred_check
    _
  $region31: #{generator_forward.1} parent=0 // pred_check_branch
    %1240 = sbr.rel (0) target = $region33
  $region32: #{generator_forward.1} parent=0 // pred_region
    _
  $region33: #{generator_forward.1} parent=0 // pred_fallthru
    _
  // Predicated region
  $region34: #{generator_forward.1} parent=0 // pred_check
    _
  $region35: #{generator_forward.1} parent=0 // pred_check_branch
    %1242 = sbr.rel (0) target = $region37
  $region36: #{generator_forward.1} parent=0 // pred_region
    _
  $region37: #{generator_forward.1} parent=0 // pred_fallthru
    _

</llo_original>
